<compile_context>
chip_gen: v5e
topology: v5e:2x2
jax: 0.10.0
libtpu: 0.0.40
codegen_flags: <defaults>
</compile_context>

<pallas_src>
import functools

import jax
import jax.numpy as jnp
from jax import lax
from jax.experimental import pallas as pl
from jax.experimental.pallas import tpu as pltpu

_LANES = 512                # lane-dense width (multiple of 128 -> unmasked vst)
_MAX_ROWS_PER_BLOCK = 512   # 512 x 512 f32 = 1 MiB per operand block


def _bits_to_open_uniform(bits_i32):
    """int32 random bits -> float32 uniform in (0, 1)."""
    mant = jnp.bitwise_and(bits_i32, jnp.int32(0x007FFFFF))            # 23 random bits
    fbits = jnp.bitwise_or(mant, jnp.int32(0x3F800000))                # float in [1, 2)
    u = lax.bitcast_convert_type(fbits, jnp.float32) - jnp.float32(1.0)  # [0, 1)
    return u + jnp.float32(2.0 ** -24)                                 # (0, 1)


def _inv_normal_cdf(p):
    """Acklam's rational approximation of the standard normal inverse CDF."""
    a1, a2, a3 = -3.969683028665376e+01, 2.209460984245205e+02, -2.759285104469687e+02
    a4, a5, a6 = 1.383577518672690e+02, -3.066479806614716e+01, 2.506628277459239e+00
    b1, b2, b3 = -5.447609879822406e+01, 1.615858368580409e+02, -1.556989798598866e+02
    b4, b5 = 6.680131188771972e+01, -1.328068155288572e+01
    c1, c2, c3 = -7.784894002430293e-03, -3.223964580411365e-01, -2.400758277161838e+00
    c4, c5, c6 = -2.549732539343734e+00, 4.374664141464968e+00, 2.938163982698783e+00
    d1, d2, d3, d4 = (7.784695709041462e-03, 3.224671290700398e-01,
                      2.445134137142996e+00, 3.754408661907416e+00)

    # Central region |p - 0.5| <= 0.5 - 0.02425.
    q = p - 0.5
    r = q * q
    num_c = ((((a1 * r + a2) * r + a3) * r + a4) * r + a5) * r + a6
    den_c = ((((b1 * r + b2) * r + b3) * r + b4) * r + b5) * r + 1.0
    x_central = num_c * q / den_c

    # Tails: evaluate the lower tail at min(p, 1-p) and flip by symmetry.
    pt = jnp.minimum(p, 1.0 - p)
    s = jnp.sqrt(-2.0 * jnp.log(pt))
    num_t = ((((c1 * s + c2) * s + c3) * s + c4) * s + c5) * s + c6
    den_t = (((d1 * s + d2) * s + d3) * s + d4) * s + 1.0
    x_tail = num_t / den_t
    x_tail = jnp.where(q > 0.0, -x_tail, x_tail)

    return jnp.where(jnp.abs(q) <= (0.5 - 0.02425), x_central, x_tail)


def _normal_from_bits(bits_i32):
    return _inv_normal_cdf(_bits_to_open_uniform(bits_i32))


def _noise_kernel_hw_prng(seed_ref, x_ref, o_ref, *, sigma):
    """TPU path: noise generated in-kernel with the hardware PRNG."""
    # Independent stream per grid block / TensorCore.
    pltpu.prng_seed(seed_ref[0], pl.program_id(0))
    raw = pltpu.prng_random_bits(x_ref.shape)
    bits = raw if raw.dtype == jnp.int32 else pltpu.bitcast(raw, jnp.int32)
    z = _normal_from_bits(bits)
    o_ref[...] = x_ref[...] + jnp.float32(sigma) * z


def _noise_kernel_host_bits(x_ref, bits_ref, o_ref, *, sigma):
    """Portable path: raw bits supplied as an input, transform + add fused."""
    z = _normal_from_bits(bits_ref[...])
    o_ref[...] = x_ref[...] + jnp.float32(sigma) * z


def noise_forward(x, *, use_noise=True, sigma=0.2, seed=0):
    """JAX/Pallas equivalent of Noise.forward.  x: (B, C, H, W) float."""
    if not use_noise:
        return x

    orig_shape = x.shape
    xf = x.astype(jnp.float32).reshape(-1)
    n = xf.size

    # Lane-dense padded 2-D layout (rows, _LANES) with balanced tiling:
    #   nblk full (tm, _LANES) blocks, tm a multiple of 8, pad waste <= 8 rows.
    rows = pl.cdiv(n, _LANES)
    rows = pl.cdiv(rows, 8) * 8
    nblk = pl.cdiv(rows, _MAX_ROWS_PER_BLOCK)
    tm = pl.cdiv(pl.cdiv(rows, nblk), 8) * 8
    rows = nblk * tm
    padded = rows * _LANES
    if padded != n:
        xf = jnp.pad(xf, (0, padded - n))
    x2 = xf.reshape(rows, _LANES)
    grid = (nblk,)

    block = pl.BlockSpec((tm, _LANES), lambda i, *_: (i, 0))
    out_shape = jax.ShapeDtypeStruct((rows, _LANES), jnp.float32)

    if jax.default_backend() == "tpu":
        seed_arr = jnp.asarray([seed], dtype=jnp.int32)
        out = pl.pallas_call(
            functools.partial(_noise_kernel_hw_prng, sigma=float(sigma)),
            out_shape=out_shape,
            grid_spec=pltpu.PrefetchScalarGridSpec(
                num_scalar_prefetch=1,
                grid=grid,
                in_specs=[block],
                out_specs=block,
            ),
            compiler_params=pltpu.CompilerParams(
                dimension_semantics=("parallel",)),
        )(seed_arr, x2)
    else:
        # Fallback (CPU / interpreter): the TPU hardware PRNG has no lowering
        # here, so draw raw bits with jax.random and keep transform+add fused
        # in a portable Pallas kernel.
        key = jax.random.PRNGKey(int(seed))
        bits = lax.bitcast_convert_type(
            jax.random.bits(key, (rows, _LANES), dtype=jnp.uint32), jnp.int32)
        out = pl.pallas_call(
            functools.partial(_noise_kernel_host_bits, sigma=float(sigma)),
            out_shape=out_shape,
            grid=grid,
            in_specs=[block, block],
            out_specs=block,
        )(x2, bits)

    # Strip padding and restore the original NCHW shape.
    return out.reshape(-1)[:n].reshape(orig_shape)


if __name__ == "__main__":
    key = jax.random.PRNGKey(0)
    x = jax.random.normal(key, (2, 4, 16, 16), dtype=jnp.float32)  # NCHW

    # use_noise=True path (the hot path, runs the Pallas kernel)
    y = noise_forward(x, use_noise=True, sigma=0.2, seed=1234)
    y = jax.block_until_ready(y)

    # use_noise=False path (identity)
    y_id = noise_forward(x, use_noise=False)
    y_id = jax.block_until_ready(y_id)

    assert y.shape == x.shape and y.dtype == jnp.float32
    assert bool(jnp.all(jnp.isfinite(y)))
    assert bool(jnp.all(y_id == x))

    # Noise actually got added and has roughly the right scale (sigma=0.2).
    diff = y - x
    assert float(jnp.max(jnp.abs(diff))) > 0.0
    assert 0.05 < float(jnp.std(diff)) < 0.5

    print("KERNEL_OK")
</pallas_src>

<mosaic_0001>
module attributes {stable_mosaic.version = 11 : i64} {
  func.func @_noise_kernel_host_bits(%arg0: i32, %arg1: memref<8x512xf32, #tpu.memory_space<vmem>>, %arg2: memref<8x512xi32, #tpu.memory_space<vmem>>, %arg3: memref<8x512xf32, #tpu.memory_space<vmem>>) attributes {dimension_semantics = [#tpu.dimension_semantics<arbitrary>], iteration_bounds = array<i64: 1>, scalar_prefetch = 0 : i64, scratch_operands = 0 : i64, tpu.core_type = #tpu.core_type<tc>, window_params = [{transform_indices = @transform_0, window_bounds = array<i64: 8, 512>}, {transform_indices = @transform_1, window_bounds = array<i64: 8, 512>}, {transform_indices = @transform_2, window_bounds = array<i64: 8, 512>}]} {
    %c0 = arith.constant 0 : index
    %c0_0 = arith.constant 0 : index
    %0 = vector.load %arg2[%c0, %c0_0] : memref<8x512xi32, #tpu.memory_space<vmem>>, vector<8x512xi32>
    %c8388607_i32 = arith.constant 8388607 : i32
    %1 = vector.broadcast %c8388607_i32 : i32 to vector<8x512xi32>
    %2 = arith.andi %0, %1 : vector<8x512xi32>
    %c1065353216_i32 = arith.constant 1065353216 : i32
    %3 = vector.broadcast %c1065353216_i32 : i32 to vector<8x512xi32>
    %4 = arith.ori %2, %3 : vector<8x512xi32>
    %5 = tpu.bitcast %4 : vector<8x512xi32> -> vector<8x512xf32>
    %cst = arith.constant 1.000000e+00 : f32
    %6 = vector.broadcast %cst : f32 to vector<8x512xf32>
    %7 = arith.subf %5, %6 : vector<8x512xf32>
    %cst_1 = arith.constant 5.96046448E-8 : f32
    %8 = vector.broadcast %cst_1 : f32 to vector<8x512xf32>
    %9 = arith.addf %7, %8 : vector<8x512xf32>
    %cst_2 = arith.constant 5.000000e-01 : f32
    %10 = vector.broadcast %cst_2 : f32 to vector<8x512xf32>
    %11 = arith.subf %9, %10 : vector<8x512xf32>
    %12 = arith.mulf %11, %11 : vector<8x512xf32>
    %cst_3 = arith.constant -39.6968307 : f32
    %13 = vector.broadcast %cst_3 : f32 to vector<8x512xf32>
    %14 = arith.mulf %13, %12 : vector<8x512xf32>
    %cst_4 = arith.constant 220.946106 : f32
    %15 = vector.broadcast %cst_4 : f32 to vector<8x512xf32>
    %16 = arith.addf %14, %15 : vector<8x512xf32>
    %17 = arith.mulf %16, %12 : vector<8x512xf32>
    %cst_5 = arith.constant -275.928497 : f32
    %18 = vector.broadcast %cst_5 : f32 to vector<8x512xf32>
    %19 = arith.addf %17, %18 : vector<8x512xf32>
    %20 = arith.mulf %19, %12 : vector<8x512xf32>
    %cst_6 = arith.constant 138.357758 : f32
    %21 = vector.broadcast %cst_6 : f32 to vector<8x512xf32>
    %22 = arith.addf %20, %21 : vector<8x512xf32>
    %23 = arith.mulf %22, %12 : vector<8x512xf32>
    %cst_7 = arith.constant -30.6647987 : f32
    %24 = vector.broadcast %cst_7 : f32 to vector<8x512xf32>
    %25 = arith.addf %23, %24 : vector<8x512xf32>
    %26 = arith.mulf %25, %12 : vector<8x512xf32>
    %cst_8 = arith.constant 2.50662827 : f32
    %27 = vector.broadcast %cst_8 : f32 to vector<8x512xf32>
    %28 = arith.addf %26, %27 : vector<8x512xf32>
    %cst_9 = arith.constant -54.4760971 : f32
    %29 = vector.broadcast %cst_9 : f32 to vector<8x512xf32>
    %30 = arith.mulf %29, %12 : vector<8x512xf32>
    %cst_10 = arith.constant 161.585831 : f32
    %31 = vector.broadcast %cst_10 : f32 to vector<8x512xf32>
    %32 = arith.addf %30, %31 : vector<8x512xf32>
    %33 = arith.mulf %32, %12 : vector<8x512xf32>
    %cst_11 = arith.constant -155.698975 : f32
    %34 = vector.broadcast %cst_11 : f32 to vector<8x512xf32>
    %35 = arith.addf %33, %34 : vector<8x512xf32>
    %36 = arith.mulf %35, %12 : vector<8x512xf32>
    %cst_12 = arith.constant 66.8013153 : f32
    %37 = vector.broadcast %cst_12 : f32 to vector<8x512xf32>
    %38 = arith.addf %36, %37 : vector<8x512xf32>
    %39 = arith.mulf %38, %12 : vector<8x512xf32>
    %cst_13 = arith.constant -13.2806816 : f32
    %40 = vector.broadcast %cst_13 : f32 to vector<8x512xf32>
    %41 = arith.addf %39, %40 : vector<8x512xf32>
    %42 = arith.mulf %41, %12 : vector<8x512xf32>
    %cst_14 = arith.constant 1.000000e+00 : f32
    %43 = vector.broadcast %cst_14 : f32 to vector<8x512xf32>
    %44 = arith.addf %42, %43 : vector<8x512xf32>
    %45 = arith.mulf %28, %11 : vector<8x512xf32>
    %46 = arith.divf %45, %44 : vector<8x512xf32>
    %cst_15 = arith.constant 1.000000e+00 : f32
    %47 = vector.broadcast %cst_15 : f32 to vector<8x512xf32>
    %48 = arith.subf %47, %9 : vector<8x512xf32>
    %49 = arith.minimumf %9, %48 : vector<8x512xf32>
    %50 = math.log %49 : vector<8x512xf32>
    %cst_16 = arith.constant -2.000000e+00 : f32
    %51 = vector.broadcast %cst_16 : f32 to vector<8x512xf32>
    %52 = arith.mulf %51, %50 : vector<8x512xf32>
    %53 = math.sqrt %52 : vector<8x512xf32>
    %cst_17 = arith.constant -0.0077848942 : f32
    %54 = vector.broadcast %cst_17 : f32 to vector<8x512xf32>
    %55 = arith.mulf %54, %53 : vector<8x512xf32>
    %cst_18 = arith.constant -0.322396457 : f32
    %56 = vector.broadcast %cst_18 : f32 to vector<8x512xf32>
    %57 = arith.addf %55, %56 : vector<8x512xf32>
    %58 = arith.mulf %57, %53 : vector<8x512xf32>
    %cst_19 = arith.constant -2.40075827 : f32
    %59 = vector.broadcast %cst_19 : f32 to vector<8x512xf32>
    %60 = arith.addf %58, %59 : vector<8x512xf32>
    %61 = arith.mulf %60, %53 : vector<8x512xf32>
    %cst_20 = arith.constant -2.54973245 : f32
    %62 = vector.broadcast %cst_20 : f32 to vector<8x512xf32>
    %63 = arith.addf %61, %62 : vector<8x512xf32>
    %64 = arith.mulf %63, %53 : vector<8x512xf32>
    %cst_21 = arith.constant 4.37466431 : f32
    %65 = vector.broadcast %cst_21 : f32 to vector<8x512xf32>
    %66 = arith.addf %64, %65 : vector<8x512xf32>
    %67 = arith.mulf %66, %53 : vector<8x512xf32>
    %cst_22 = arith.constant 2.938164 : f32
    %68 = vector.broadcast %cst_22 : f32 to vector<8x512xf32>
    %69 = arith.addf %67, %68 : vector<8x512xf32>
    %cst_23 = arith.constant 0.00778469583 : f32
    %70 = vector.broadcast %cst_23 : f32 to vector<8x512xf32>
    %71 = arith.mulf %70, %53 : vector<8x512xf32>
    %cst_24 = arith.constant 0.322467119 : f32
    %72 = vector.broadcast %cst_24 : f32 to vector<8x512xf32>
    %73 = arith.addf %71, %72 : vector<8x512xf32>
    %74 = arith.mulf %73, %53 : vector<8x512xf32>
    %cst_25 = arith.constant 2.44513416 : f32
    %75 = vector.broadcast %cst_25 : f32 to vector<8x512xf32>
    %76 = arith.addf %74, %75 : vector<8x512xf32>
    %77 = arith.mulf %76, %53 : vector<8x512xf32>
    %cst_26 = arith.constant 3.7544086 : f32
    %78 = vector.broadcast %cst_26 : f32 to vector<8x512xf32>
    %79 = arith.addf %77, %78 : vector<8x512xf32>
    %80 = arith.mulf %79, %53 : vector<8x512xf32>
    %cst_27 = arith.constant 1.000000e+00 : f32
    %81 = vector.broadcast %cst_27 : f32 to vector<8x512xf32>
    %82 = arith.addf %80, %81 : vector<8x512xf32>
    %83 = arith.divf %69, %82 : vector<8x512xf32>
    %cst_28 = arith.constant 0.000000e+00 : f32
    %84 = vector.broadcast %cst_28 : f32 to vector<8x512xf32>
    %85 = arith.cmpf ogt, %11, %84 : vector<8x512xf32>
    %cst_29 = arith.constant 0.000000e+00 : f32
    %86 = vector.broadcast %cst_29 : f32 to vector<8x512xf32>
    %87 = arith.subf %86, %83 : vector<8x512xf32>
    %88 = arith.select %85, %87, %83 : vector<8x512xi1>, vector<8x512xf32>
    %89 = math.absf %11 : vector<8x512xf32>
    %cst_30 = arith.constant 4.757500e-01 : f32
    %90 = vector.broadcast %cst_30 : f32 to vector<8x512xf32>
    %91 = arith.cmpf ole, %89, %90 : vector<8x512xf32>
    %92 = arith.select %91, %46, %88 : vector<8x512xi1>, vector<8x512xf32>
    %c0_31 = arith.constant 0 : index
    %c0_32 = arith.constant 0 : index
    %93 = vector.load %arg1[%c0_31, %c0_32] : memref<8x512xf32, #tpu.memory_space<vmem>>, vector<8x512xf32>
    %cst_33 = arith.constant 2.000000e-01 : f32
    %94 = vector.broadcast %cst_33 : f32 to vector<8x512xf32>
    %95 = arith.mulf %94, %92 : vector<8x512xf32>
    %96 = arith.addf %93, %95 : vector<8x512xf32>
    %c0_34 = arith.constant 0 : index
    %c0_35 = arith.constant 0 : index
    %97 = vector.load %arg3[%c0_34, %c0_35] : memref<8x512xf32, #tpu.memory_space<vmem>>, vector<8x512xf32>
    tpu.vector_store %arg3[%c0_34, %c0_35], %96 {strides = array<i32>} : memref<8x512xf32, #tpu.memory_space<vmem>>, vector<8x512xf32>,
    return
  }
  func.func @transform_0(%arg0: i32) -> (i32, i32) {
    %c0_i32 = arith.constant 0 : i32
    %c0_i32_0 = arith.constant 0 : i32
    return %arg0, %c0_i32 : i32, i32
  }
  func.func @transform_1(%arg0: i32) -> (i32, i32) {
    %c0_i32 = arith.constant 0 : i32
    %c0_i32_0 = arith.constant 0 : i32
    return %arg0, %c0_i32 : i32, i32
  }
  func.func @transform_2(%arg0: i32) -> (i32, i32) {
    %c0_i32 = arith.constant 0 : i32
    %c0_i32_0 = arith.constant 0 : i32
    return %arg0, %c0_i32 : i32, i32
  }
}

</mosaic_0001>

<llo_original>
// kernel: tpu_custom_call.1
$region0: #{tpu_custom_call.1}
  #allocation0 [shape = 'u32[]', space=smem, size = 0x4, offset = 0x4, fixed_abs, tag = 'smem constant byte address 0x4 - core index']
  #allocation1 [shape = 'u32[72,128]{1,0:T(1,128)}', space=vmem, size = 0x9000, scoped, tag = 'internal scratch']
  %s0 = inlined_call_operand.hbm [shape: f32[8,512], index: 0, kind: input, shape index: {}]
  %s1 = inlined_call_operand.hbm [shape: s32[8,512], index: 1, kind: input, shape index: {}]
  %s2 = inlined_call_operand.hbm [shape: f32[8,512], index: 2, kind: output, shape index: {}]
  %s3 = sld [smem:[#allocation0]]
  $region26: #{tpu_custom_call.1} parent=0
    _
  %s5 = ssub.s32 1, %s3
  %s6 = scalar_select 0, %s5, %s3
  $region1: #{tpu_custom_call.1} parent=0
    #allocation2 [shape = 'u8[16384]{0}', space=vmem, size = 0x4000, scoped, tag = 'input window, operand 0, single buffered']
    #allocation3 [shape = 's32[1]{0}', space=sflag, size = 0x4, scoped, tag = 'scoped memory for tpu_custom_call.1']
    #allocation4 [shape = 's32[1]{0}', space=sflag, size = 0x4, scoped, tag = 'scoped memory for tpu_custom_call.1']
    #allocation5 [shape = 'u8[16384]{0}', space=vmem, size = 0x4000, scoped, tag = 'input window, operand 1, single buffered']
    #allocation6 [shape = 's32[1]{0}', space=sflag, size = 0x4, scoped, tag = 'scoped memory for tpu_custom_call.1']
    #allocation7 [shape = 'u8[16384]{0}', space=vmem, size = 0x4000, scoped, tag = 'output window, operand 0, single buffered']
    %7 = vsyncpa [#allocation3], 0
    %8 = vsyncpa [#allocation6], 0
    %9 = vsyncpa [#allocation4], 0
    // Predicated region
    $region2: #{tpu_custom_call.1} parent=1 // pred_check
      _
    $region3: #{tpu_custom_call.1} parent=1 // pred_check_branch
      %11 = sbr.rel (0) target = $region5
    $region4: #{tpu_custom_call.1} parent=1 // pred_region
      %13 = vsyncadd [#allocation3], 0
      %s15 = sshll.u32 %s0, 4
      %s16 = int_to_ptr.hbm [resolvable:$true] %s15
      %s17 = sshll.u32 [#allocation2], 4
      %s18 = int_to_ptr.vmem [resolvable:$true] %s17
      %20 = dma.hbm_to_vmem [thread:$0]  %s16, 512, %s18, [#allocation3]
    $region5: #{tpu_custom_call.1} parent=1 // pred_fallthru
      _
    // Predicated region
    $region6: #{tpu_custom_call.1} parent=1 // pred_check
      _
    $region7: #{tpu_custom_call.1} parent=1 // pred_check_branch
      %22 = sbr.rel (0) target = $region9
    $region8: #{tpu_custom_call.1} parent=1 // pred_region
      %24 = vsyncadd [#allocation6], 0
      %s26 = sshll.u32 %s1, 4
      %s27 = int_to_ptr.hbm [resolvable:$true] %s26
      %s28 = sshll.u32 [#allocation5], 4
      %s29 = int_to_ptr.vmem [resolvable:$true] %s28
      %31 = dma.hbm_to_vmem [thread:$0]  %s27, 512, %s29, [#allocation6]
    $region9: #{tpu_custom_call.1} parent=1 // pred_fallthru
      _
    // Predicated region
    $region10: #{tpu_custom_call.1} parent=1 // pred_check
      _
    $region11: #{tpu_custom_call.1} parent=1 // pred_check_branch
      %33 = sbr.rel (0) target = $region13
    $region12: #{tpu_custom_call.1} parent=1 // pred_region
      %35 = dma.done [#allocation3], 512
    $region13: #{tpu_custom_call.1} parent=1 // pred_fallthru
      _
    // Predicated region
    $region14: #{tpu_custom_call.1} parent=1 // pred_check
      _
    $region15: #{tpu_custom_call.1} parent=1 // pred_check_branch
      %37 = sbr.rel (0) target = $region17
    $region16: #{tpu_custom_call.1} parent=1 // pred_region
      %39 = dma.done [#allocation6], 512
    $region17: #{tpu_custom_call.1} parent=1 // pred_fallthru
      _
    %v40 = vld [vmem:[#allocation5] sm:$0xff]
    %v41 = vld [vmem:[#allocation5 + $0x8] sm:$0xff]
    %v42 = vld [vmem:[#allocation5 + $0x10] sm:$0xff]
    %v43 = vld [vmem:[#allocation5 + $0x18] sm:$0xff]
    %v44 = vand.u32 %v40, 8388607
    %v45 = vand.u32 %v41, 8388607
    %v46 = vand.u32 %v42, 8388607
    %v47 = vand.u32 %v43, 8388607
    %v48 = vor.u32 %v44, 1065353216
    %v49 = vor.u32 %v45, 1065353216
    %v50 = vor.u32 %v46, 1065353216
    %v51 = vor.u32 %v47, 1065353216
    %v56 = vsub.f32 %v48, 1.0
    %v57 = vsub.f32 %v49, 1.0
    %v58 = vsub.f32 %v50, 1.0
    %v59 = vsub.f32 %v51, 1.0
    %v60 = vadd.f32 %v56, 5.9604645e-08
    %v61 = vadd.f32 %v57, 5.9604645e-08
    %v62 = vadd.f32 %v58, 5.9604645e-08
    %v63 = vadd.f32 %v59, 5.9604645e-08
    %v64 = vsub.f32 %v60, 0.5
    %v65 = vsub.f32 %v61, 0.5
    %v66 = vsub.f32 %v62, 0.5
    %v67 = vsub.f32 %v63, 0.5
    %v68 = vmul.f32 %v64, %v64
    %v69 = vmul.f32 %v65, %v65
    %v70 = vmul.f32 %v66, %v66
    %v71 = vmul.f32 %v67, %v67
    %v72 = vmul.f32 %v68, -39.69683
    %v73 = vmul.f32 %v69, -39.69683
    %v74 = vmul.f32 %v70, -39.69683
    %v75 = vmul.f32 %v71, -39.69683
    %v76 = vadd.f32 %v72, 220.9461
    %v77 = vadd.f32 %v73, 220.9461
    %v78 = vadd.f32 %v74, 220.9461
    %v79 = vadd.f32 %v75, 220.9461
    %v80 = vmul.f32 %v76, %v68
    %v81 = vmul.f32 %v77, %v69
    %v82 = vmul.f32 %v78, %v70
    %v83 = vmul.f32 %v79, %v71
    %v84 = vadd.f32 %v80, -275.9285
    %v85 = vadd.f32 %v81, -275.9285
    %v86 = vadd.f32 %v82, -275.9285
    %v87 = vadd.f32 %v83, -275.9285
    %v88 = vmul.f32 %v84, %v68
    %v89 = vmul.f32 %v85, %v69
    %v90 = vmul.f32 %v86, %v70
    %v91 = vmul.f32 %v87, %v71
    %v92 = vadd.f32 %v88, 138.35776
    %v93 = vadd.f32 %v89, 138.35776
    %v94 = vadd.f32 %v90, 138.35776
    %v95 = vadd.f32 %v91, 138.35776
    %v96 = vmul.f32 %v92, %v68
    %v97 = vmul.f32 %v93, %v69
    %v98 = vmul.f32 %v94, %v70
    %v99 = vmul.f32 %v95, %v71
    %v100 = vadd.f32 %v96, -30.664799
    %v101 = vadd.f32 %v97, -30.664799
    %v102 = vadd.f32 %v98, -30.664799
    %v103 = vadd.f32 %v99, -30.664799
    %v104 = vmul.f32 %v100, %v68
    %v105 = vmul.f32 %v101, %v69
    %v106 = vmul.f32 %v102, %v70
    %v107 = vmul.f32 %v103, %v71
    %v108 = vadd.f32 %v104, 2.5066283
    %v109 = vadd.f32 %v105, 2.5066283
    %v110 = vadd.f32 %v106, 2.5066283
    %v111 = vadd.f32 %v107, 2.5066283
    %v112 = vmul.f32 %v68, -54.476097
    %v113 = vmul.f32 %v69, -54.476097
    %v114 = vmul.f32 %v70, -54.476097
    %v115 = vmul.f32 %v71, -54.476097
    %v116 = vadd.f32 %v112, 161.58583
    %v117 = vadd.f32 %v113, 161.58583
    %v118 = vadd.f32 %v114, 161.58583
    %v119 = vadd.f32 %v115, 161.58583
    %v120 = vmul.f32 %v116, %v68
    %v121 = vmul.f32 %v117, %v69
    %v122 = vmul.f32 %v118, %v70
    %v123 = vmul.f32 %v119, %v71
    %v124 = vadd.f32 %v120, -155.69897
    %v125 = vadd.f32 %v121, -155.69897
    %v126 = vadd.f32 %v122, -155.69897
    %v127 = vadd.f32 %v123, -155.69897
    %v128 = vmul.f32 %v124, %v68
    %v129 = vmul.f32 %v125, %v69
    %v130 = vmul.f32 %v126, %v70
    %v131 = vmul.f32 %v127, %v71
    %v132 = vadd.f32 %v128, 66.801315
    %v133 = vadd.f32 %v129, 66.801315
    %v134 = vadd.f32 %v130, 66.801315
    %v135 = vadd.f32 %v131, 66.801315
    %v136 = vmul.f32 %v132, %v68
    %v137 = vmul.f32 %v133, %v69
    %v138 = vmul.f32 %v134, %v70
    %v139 = vmul.f32 %v135, %v71
    %v140 = vadd.f32 %v136, -13.280682
    %v141 = vadd.f32 %v137, -13.280682
    %v142 = vadd.f32 %v138, -13.280682
    %v143 = vadd.f32 %v139, -13.280682
    %v144 = vmul.f32 %v140, %v68
    %v145 = vmul.f32 %v141, %v69
    %v146 = vmul.f32 %v142, %v70
    %v147 = vmul.f32 %v143, %v71
    %v148 = vadd.f32 %v144, 1.0
    %v149 = vadd.f32 %v145, 1.0
    %v150 = vadd.f32 %v146, 1.0
    %v151 = vadd.f32 %v147, 1.0
    %v152 = vmul.f32 %v108, %v64
    %v153 = vmul.f32 %v109, %v65
    %v154 = vmul.f32 %v110, %v66
    %v155 = vmul.f32 %v111, %v67
    %v156 = vrcp.pop %v148
    %v157 = vmul.f32 %v148, %v156
    %v158 = vsub.f32 1.0, %v157
    %v159 = vmul.f32 %v156, %v158
    %v160 = vadd.f32 %v156, %v159
    %vm161 = vweird.f32 %v148
    %vm162 = vweird.f32 %v156
    %vm163 = vmor %vm161, %vm162
    %v164 = vsel %vm163, %v156, %v160
    %v165 = vand.u32 2147483647, %v148
    %vm166 = vcmp.eq.f32.partialorder %v165, 8.507059e+37
    %v167 = vand.u32 %v148, 2147483648
    %v168 = vor.u32 1.1754944e-38, %v167
    %v169 = vsel %vm166, %v168, %v164
    %v170 = vmul.f32 %v152, %v169
    %v171 = vrcp.pop %v149
    %v172 = vmul.f32 %v149, %v171
    %v173 = vsub.f32 1.0, %v172
    %v174 = vmul.f32 %v171, %v173
    %v175 = vadd.f32 %v171, %v174
    %vm176 = vweird.f32 %v149
    %vm177 = vweird.f32 %v171
    %vm178 = vmor %vm176, %vm177
    %v179 = vsel %vm178, %v171, %v175
    %v180 = vand.u32 2147483647, %v149
    %vm181 = vcmp.eq.f32.partialorder %v180, 8.507059e+37
    %v182 = vand.u32 %v149, 2147483648
    %v183 = vor.u32 1.1754944e-38, %v182
    %v184 = vsel %vm181, %v183, %v179
    %v185 = vmul.f32 %v153, %v184
    %v186 = vrcp.pop %v150
    %v187 = vmul.f32 %v150, %v186
    %v188 = vsub.f32 1.0, %v187
    %v189 = vmul.f32 %v186, %v188
    %v190 = vadd.f32 %v186, %v189
    %vm191 = vweird.f32 %v150
    %vm192 = vweird.f32 %v186
    %vm193 = vmor %vm191, %vm192
    %v194 = vsel %vm193, %v186, %v190
    %v195 = vand.u32 2147483647, %v150
    %vm196 = vcmp.eq.f32.partialorder %v195, 8.507059e+37
    %v197 = vand.u32 %v150, 2147483648
    %v198 = vor.u32 1.1754944e-38, %v197
    %v199 = vsel %vm196, %v198, %v194
    %v200 = vmul.f32 %v154, %v199
    %v201 = vrcp.pop %v151
    %v202 = vmul.f32 %v151, %v201
    %v203 = vsub.f32 1.0, %v202
    %v204 = vmul.f32 %v201, %v203
    %v205 = vadd.f32 %v201, %v204
    %vm206 = vweird.f32 %v151
    %vm207 = vweird.f32 %v201
    %vm208 = vmor %vm206, %vm207
    %v209 = vsel %vm208, %v201, %v205
    %v210 = vand.u32 2147483647, %v151
    %vm211 = vcmp.eq.f32.partialorder %v210, 8.507059e+37
    %v212 = vand.u32 %v151, 2147483648
    %v213 = vor.u32 1.1754944e-38, %v212
    %v214 = vsel %vm211, %v213, %v209
    %v215 = vmul.f32 %v155, %v214
    %v216 = vsub.f32 1.0, %v60
    %v217 = vsub.f32 1.0, %v61
    %v218 = vsub.f32 1.0, %v62
    %v219 = vsub.f32 1.0, %v63
    %v220 = vmin.f32 %v60, %v216
    %v221 = vmin.f32 %v61, %v217
    %v222 = vmin.f32 %v62, %v218
    %v223 = vmin.f32 %v63, %v219
    %v224 = vlog2.pop %v220
    %v225 = vmul.f32 %v224, 0.6931472
    %v226 = vlog2.pop %v221
    %v227 = vmul.f32 %v226, 0.6931472
    %v228 = vlog2.pop %v222
    %v229 = vmul.f32 %v228, 0.6931472
    %v230 = vlog2.pop %v223
    %v231 = vmul.f32 %v230, 0.6931472
    %v232 = vmul.f32 %v225, -2.0
    %v233 = vmul.f32 %v227, -2.0
    %v234 = vmul.f32 %v229, -2.0
    %v235 = vmul.f32 %v231, -2.0
    %v236 = vrsqrt.pop %v232
    %v237 = vmul.f32 %v236, %v232
    %v238 = vmul.f32 %v237, %v236
    %v239 = vmul.f32 0.5, %v238
    %v240 = vsub.f32 1.5, %v239
    %v241 = vmul.f32 %v236, %v240
    %v242 = vmul.f32 %v232, %v241
    %vm243 = vcmp.eq.f32.partialorder %v232, inf
    %v244 = vsel %vm243, %v232, %v242
    %vm245 = vcmp.eq.f32.partialorder %v232, 0.0
    %v246 = vand.u32 %v232, 2147483648
    %v247 = vsel %vm245, %v246, %v244
    %v248 = vrsqrt.pop %v233
    %v249 = vmul.f32 %v248, %v233
    %v250 = vmul.f32 %v249, %v248
    %v251 = vmul.f32 0.5, %v250
    %v252 = vsub.f32 1.5, %v251
    %v253 = vmul.f32 %v248, %v252
    %v254 = vmul.f32 %v233, %v253
    %vm255 = vcmp.eq.f32.partialorder %v233, inf
    %v256 = vsel %vm255, %v233, %v254
    %vm257 = vcmp.eq.f32.partialorder %v233, 0.0
    %v258 = vand.u32 %v233, 2147483648
    %v259 = vsel %vm257, %v258, %v256
    %v260 = vrsqrt.pop %v234
    %v261 = vmul.f32 %v260, %v234
    %v262 = vmul.f32 %v261, %v260
    %v263 = vmul.f32 0.5, %v262
    %v264 = vsub.f32 1.5, %v263
    %v265 = vmul.f32 %v260, %v264
    %v266 = vmul.f32 %v234, %v265
    %vm267 = vcmp.eq.f32.partialorder %v234, inf
    %v268 = vsel %vm267, %v234, %v266
    %vm269 = vcmp.eq.f32.partialorder %v234, 0.0
    %v270 = vand.u32 %v234, 2147483648
    %v271 = vsel %vm269, %v270, %v268
    %v272 = vrsqrt.pop %v235
    %v273 = vmul.f32 %v272, %v235
    %v274 = vmul.f32 %v273, %v272
    %v275 = vmul.f32 0.5, %v274
    %v276 = vsub.f32 1.5, %v275
    %v277 = vmul.f32 %v272, %v276
    %v278 = vmul.f32 %v235, %v277
    %vm279 = vcmp.eq.f32.partialorder %v235, inf
    %v280 = vsel %vm279, %v235, %v278
    %vm281 = vcmp.eq.f32.partialorder %v235, 0.0
    %v282 = vand.u32 %v235, 2147483648
    %v283 = vsel %vm281, %v282, %v280
    %v284 = vmul.f32 %v247, -0.007784894
    %v285 = vmul.f32 %v259, -0.007784894
    %v286 = vmul.f32 %v271, -0.007784894
    %v287 = vmul.f32 %v283, -0.007784894
    %v288 = vadd.f32 %v284, -0.32239646
    %v289 = vadd.f32 %v285, -0.32239646
    %v290 = vadd.f32 %v286, -0.32239646
    %v291 = vadd.f32 %v287, -0.32239646
    %v292 = vmul.f32 %v288, %v247
    %v293 = vmul.f32 %v289, %v259
    %v294 = vmul.f32 %v290, %v271
    %v295 = vmul.f32 %v291, %v283
    %v296 = vadd.f32 %v292, -2.4007583
    %v297 = vadd.f32 %v293, -2.4007583
    %v298 = vadd.f32 %v294, -2.4007583
    %v299 = vadd.f32 %v295, -2.4007583
    %v300 = vmul.f32 %v296, %v247
    %v301 = vmul.f32 %v297, %v259
    %v302 = vmul.f32 %v298, %v271
    %v303 = vmul.f32 %v299, %v283
    %v304 = vadd.f32 %v300, -2.5497324
    %v305 = vadd.f32 %v301, -2.5497324
    %v306 = vadd.f32 %v302, -2.5497324
    %v307 = vadd.f32 %v303, -2.5497324
    %v308 = vmul.f32 %v304, %v247
    %v309 = vmul.f32 %v305, %v259
    %v310 = vmul.f32 %v306, %v271
    %v311 = vmul.f32 %v307, %v283
    %v312 = vadd.f32 %v308, 4.3746643
    %v313 = vadd.f32 %v309, 4.3746643
    %v314 = vadd.f32 %v310, 4.3746643
    %v315 = vadd.f32 %v311, 4.3746643
    %v316 = vmul.f32 %v312, %v247
    %v317 = vmul.f32 %v313, %v259
    %v318 = vmul.f32 %v314, %v271
    %v319 = vmul.f32 %v315, %v283
    %v320 = vadd.f32 %v316, 2.938164
    %v321 = vadd.f32 %v317, 2.938164
    %v322 = vadd.f32 %v318, 2.938164
    %v323 = vadd.f32 %v319, 2.938164
    %v324 = vmul.f32 %v247, 0.007784696
    %v325 = vmul.f32 %v259, 0.007784696
    %v326 = vmul.f32 %v271, 0.007784696
    %v327 = vmul.f32 %v283, 0.007784696
    %v328 = vadd.f32 %v324, 0.32246712
    %v329 = vadd.f32 %v325, 0.32246712
    %v330 = vadd.f32 %v326, 0.32246712
    %v331 = vadd.f32 %v327, 0.32246712
    %v332 = vmul.f32 %v328, %v247
    %v333 = vmul.f32 %v329, %v259
    %v334 = vmul.f32 %v330, %v271
    %v335 = vmul.f32 %v331, %v283
    %v336 = vadd.f32 %v332, 2.4451342
    %v337 = vadd.f32 %v333, 2.4451342
    %v338 = vadd.f32 %v334, 2.4451342
    %v339 = vadd.f32 %v335, 2.4451342
    %v340 = vmul.f32 %v336, %v247
    %v341 = vmul.f32 %v337, %v259
    %v342 = vmul.f32 %v338, %v271
    %v343 = vmul.f32 %v339, %v283
    %v344 = vadd.f32 %v340, 3.7544086
    %v345 = vadd.f32 %v341, 3.7544086
    %v346 = vadd.f32 %v342, 3.7544086
    %v347 = vadd.f32 %v343, 3.7544086
    %v348 = vmul.f32 %v344, %v247
    %v349 = vmul.f32 %v345, %v259
    %v350 = vmul.f32 %v346, %v271
    %v351 = vmul.f32 %v347, %v283
    %v352 = vadd.f32 %v348, 1.0
    %v353 = vadd.f32 %v349, 1.0
    %v354 = vadd.f32 %v350, 1.0
    %v355 = vadd.f32 %v351, 1.0
    %v356 = vrcp.pop %v352
    %v357 = vmul.f32 %v352, %v356
    %v358 = vsub.f32 1.0, %v357
    %v359 = vmul.f32 %v356, %v358
    %v360 = vadd.f32 %v356, %v359
    %vm361 = vweird.f32 %v352
    %vm362 = vweird.f32 %v356
    %vm363 = vmor %vm361, %vm362
    %v364 = vsel %vm363, %v356, %v360
    %v365 = vand.u32 2147483647, %v352
    %vm366 = vcmp.eq.f32.partialorder %v365, 8.507059e+37
    %v367 = vand.u32 %v352, 2147483648
    %v368 = vor.u32 1.1754944e-38, %v367
    %v369 = vsel %vm366, %v368, %v364
    %v370 = vmul.f32 %v320, %v369
    %v371 = vrcp.pop %v353
    %v372 = vmul.f32 %v353, %v371
    %v373 = vsub.f32 1.0, %v372
    %v374 = vmul.f32 %v371, %v373
    %v375 = vadd.f32 %v371, %v374
    %vm376 = vweird.f32 %v353
    %vm377 = vweird.f32 %v371
    %vm378 = vmor %vm376, %vm377
    %v379 = vsel %vm378, %v371, %v375
    %v380 = vand.u32 2147483647, %v353
    %vm381 = vcmp.eq.f32.partialorder %v380, 8.507059e+37
    %v382 = vand.u32 %v353, 2147483648
    %v383 = vor.u32 1.1754944e-38, %v382
    %v384 = vsel %vm381, %v383, %v379
    %v385 = vmul.f32 %v321, %v384
    %v386 = vrcp.pop %v354
    %v387 = vmul.f32 %v354, %v386
    %v388 = vsub.f32 1.0, %v387
    %v389 = vmul.f32 %v386, %v388
    %v390 = vadd.f32 %v386, %v389
    %vm391 = vweird.f32 %v354
    %vm392 = vweird.f32 %v386
    %vm393 = vmor %vm391, %vm392
    %v394 = vsel %vm393, %v386, %v390
    %v395 = vand.u32 2147483647, %v354
    %vm396 = vcmp.eq.f32.partialorder %v395, 8.507059e+37
    %v397 = vand.u32 %v354, 2147483648
    %v398 = vor.u32 1.1754944e-38, %v397
    %v399 = vsel %vm396, %v398, %v394
    %v400 = vmul.f32 %v322, %v399
    %v401 = vrcp.pop %v355
    %v402 = vmul.f32 %v355, %v401
    %v403 = vsub.f32 1.0, %v402
    %v404 = vmul.f32 %v401, %v403
    %v405 = vadd.f32 %v401, %v404
    %vm406 = vweird.f32 %v355
    %vm407 = vweird.f32 %v401
    %vm408 = vmor %vm406, %vm407
    %v409 = vsel %vm408, %v401, %v405
    %v410 = vand.u32 2147483647, %v355
    %vm411 = vcmp.eq.f32.partialorder %v410, 8.507059e+37
    %v412 = vand.u32 %v355, 2147483648
    %v413 = vor.u32 1.1754944e-38, %v412
    %v414 = vsel %vm411, %v413, %v409
    %v415 = vmul.f32 %v323, %v414
    %vm416 = vcmp.gt.f32.partialorder %v64, 0.0
    %vm417 = vcmp.gt.f32.partialorder %v65, 0.0
    %vm418 = vcmp.gt.f32.partialorder %v66, 0.0
    %vm419 = vcmp.gt.f32.partialorder %v67, 0.0
    %v420 = vsub.f32 0.0, %v370
    %v421 = vsub.f32 0.0, %v385
    %v422 = vsub.f32 0.0, %v400
    %v423 = vsub.f32 0.0, %v415
    %v424 = vsel %vm416, %v420, %v370
    %v425 = vsel %vm417, %v421, %v385
    %v426 = vsel %vm418, %v422, %v400
    %v427 = vsel %vm419, %v423, %v415
    %v428 = vand.u32 2147483647, %v64
    %v429 = vand.u32 2147483647, %v65
    %v430 = vand.u32 2147483647, %v66
    %v431 = vand.u32 2147483647, %v67
    %vm432 = vcmp.le.f32.partialorder %v428, 0.47575
    %vm433 = vcmp.le.f32.partialorder %v429, 0.47575
    %vm434 = vcmp.le.f32.partialorder %v430, 0.47575
    %vm435 = vcmp.le.f32.partialorder %v431, 0.47575
    %v436 = vsel %vm432, %v170, %v424
    %v437 = vsel %vm433, %v185, %v425
    %v438 = vsel %vm434, %v200, %v426
    %v439 = vsel %vm435, %v215, %v427
    %v440 = vld [vmem:[#allocation2] sm:$0xff]
    %v441 = vld [vmem:[#allocation2 + $0x8] sm:$0xff]
    %v442 = vld [vmem:[#allocation2 + $0x10] sm:$0xff]
    %v443 = vld [vmem:[#allocation2 + $0x18] sm:$0xff]
    %v444 = vmul.f32 %v436, 0.2
    %v445 = vmul.f32 %v437, 0.2
    %v446 = vmul.f32 %v438, 0.2
    %v447 = vmul.f32 %v439, 0.2
    %v448 = vadd.f32 %v440, %v444
    %v449 = vadd.f32 %v441, %v445
    %v450 = vadd.f32 %v442, %v446
    %v451 = vadd.f32 %v443, %v447
    %452 = vst [vmem:[#allocation7] sm:$0xff] %v448
    %453 = vst [vmem:[#allocation7 + $0x8] sm:$0xff] %v449
    %454 = vst [vmem:[#allocation7 + $0x10] sm:$0xff] %v450
    %455 = vst [vmem:[#allocation7 + $0x18] sm:$0xff] %v451
    // Predicated region
    $region18: #{tpu_custom_call.1} parent=1 // pred_check
      _
    $region19: #{tpu_custom_call.1} parent=1 // pred_check_branch
      %457 = sbr.rel (0) target = $region21
    $region20: #{tpu_custom_call.1} parent=1 // pred_region
      %459 = vsyncadd [#allocation4], 0
      %s461 = sshll.u32 [#allocation7], 4
      %s462 = int_to_ptr.vmem [resolvable:$true] %s461
      %s463 = sshll.u32 %s2, 4
      %s464 = int_to_ptr.hbm [resolvable:$true] %s463
      %466 = dma.vmem_to_hbm [thread:$0]  %s462, 512, %s464, [#allocation4]
    $region21: #{tpu_custom_call.1} parent=1 // pred_fallthru
      _
    // Predicated region
    $region22: #{tpu_custom_call.1} parent=1 // pred_check
      _
    $region23: #{tpu_custom_call.1} parent=1 // pred_check_branch
      %468 = sbr.rel (0) target = $region25
    $region24: #{tpu_custom_call.1} parent=1 // pred_region
      %470 = dma.done [#allocation4], 512
    $region25: #{tpu_custom_call.1} parent=1 // pred_fallthru
      _
    %471 = vsyncpa [#allocation3], 1
    %472 = vsyncpa [#allocation6], 1
    %473 = vsyncpa [#allocation4], 1

</llo_original>
